<compile_context>
chip_gen: v5e
topology: v5e:2x2
jax: 0.10.0
libtpu: 0.0.40
codegen_flags: <defaults>
</compile_context>

<pallas_src>
import jax
import jax.numpy as jnp
from jax.experimental import pallas as pl
from jax.experimental.pallas import tpu as pltpu

H = 5  # hidden width of the MLP


def mlp_kernel(x_ref, w1_ref, b1_ref, w2_ref, b2_ref, w3_ref, b3_ref, o_ref):
    # x_ref: (1, TN) fp32, batch on the 128-lane axis. Weights/biases in SMEM.
    x = x_ref[...]  # already fp32, no cast needed

    # Layer 1: Linear(1, 5) is an outer product -> 5 broadcast FMAs on the VPU.
    h1 = [jnp.maximum(b1_ref[j] + w1_ref[j] * x, 0.0) for j in range(H)]

    # Layer 2: Linear(5, 5); 5-term MAC chain per output, bias as accumulator init.
    h2 = []
    for i in range(H):
        acc = b2_ref[i] + w2_ref[i, 0] * h1[0]
        for j in range(1, H):
            acc = acc + w2_ref[i, j] * h1[j]
        h2.append(jnp.maximum(acc, 0.0))

    # Layer 3: Linear(5, 1).
    out = b3_ref[0] + w3_ref[0] * h2[0]
    for j in range(1, H):
        out = out + w3_ref[j] * h2[j]

    o_ref[...] = out  # (1, TN) lane-dense, unmasked store


def mlp_forward(x, params, *, tile_n=512):
    """x: (N, 1) float32 (PyTorch Linear layout). Returns (N, 1) float32."""
    N = x.shape[0]

    # Lane-dense: batch -> last (lane) axis; pad N to a multiple of the tile.
    tn = min(tile_n, max(128, int(pl.next_power_of_2(N))))
    n_pad = pl.cdiv(N, tn) * tn
    xt = jnp.zeros((1, n_pad), jnp.float32).at[0, :N].set(x[:, 0])

    smem = pl.BlockSpec(memory_space=pltpu.MemorySpace.SMEM)
    lane = pl.BlockSpec((1, tn), lambda i: (0, i))

    out = pl.pallas_call(
        mlp_kernel,
        out_shape=jax.ShapeDtypeStruct((1, n_pad), jnp.float32),
        grid_spec=pl.GridSpec(
            grid=(n_pad // tn,),
            in_specs=[lane, smem, smem, smem, smem, smem, smem],
            out_specs=lane,
        ),
        compiler_params=pltpu.CompilerParams(
            # independent batch tiles -> shard across TensorCores (v7x megacore)
            dimension_semantics=("parallel",),
        ),
    )(
        xt,
        params["w1"], params["b1"],
        params["w2"], params["b2"],
        params["w3"], params["b3"],
    )
    return out[0, :N].reshape(N, 1)


def init_params(key):
    """torch.nn.Linear-style init: U(-1/sqrt(fan_in), 1/sqrt(fan_in)).
    Weights stored in PyTorch [out, in] convention (flattened when a dim is 1)."""
    ks = jax.random.split(key, 6)

    def u(k, shape, fan_in):
        bound = 1.0 / (fan_in ** 0.5)
        return jax.random.uniform(k, shape, jnp.float32, -bound, bound)

    return {
        "w1": u(ks[0], (H,), 1),     # fc1.weight (5, 1) flattened
        "b1": u(ks[1], (H,), 1),
        "w2": u(ks[2], (H, H), H),   # fc2.weight (5, 5): [out, in]
        "b2": u(ks[3], (H,), H),
        "w3": u(ks[4], (H,), H),     # fc3.weight (1, 5) flattened
        "b3": u(ks[5], (1,), H),
    }


def reference_forward(x, p):
    w1 = p["w1"].reshape(H, 1)
    w3 = p["w3"].reshape(1, H)
    h1 = jnp.maximum(x @ w1.T + p["b1"], 0.0)
    h2 = jnp.maximum(h1 @ p["w2"].T + p["b2"], 0.0)
    return h2 @ w3.T + p["b3"]


if __name__ == "__main__":
    key = jax.random.PRNGKey(0)
    k_param, k_x = jax.random.split(key)

    params = init_params(k_param)
    x = jax.random.normal(k_x, (8, 1), jnp.float32)  # batch=8, in_features=1

    out = mlp_forward(x, params)
    out = jax.block_until_ready(out)

    ref = reference_forward(x, params)
    assert out.shape == (8, 1), out.shape
    assert jnp.allclose(out, ref, atol=1e-5, rtol=1e-5), (out, ref)

    print("KERNEL_OK")
</pallas_src>

<mosaic_0001>
module attributes {stable_mosaic.version = 11 : i64} {
  func.func @mlp_kernel(%arg0: i32, %arg1: memref<1x128xf32, #tpu.memory_space<vmem>>, %arg2: memref<5xf32, #tpu.memory_space<smem>>, %arg3: memref<5xf32, #tpu.memory_space<smem>>, %arg4: memref<5x5xf32, #tpu.memory_space<smem>>, %arg5: memref<5xf32, #tpu.memory_space<smem>>, %arg6: memref<5xf32, #tpu.memory_space<smem>>, %arg7: memref<1xf32, #tpu.memory_space<smem>>, %arg8: memref<1x128xf32, #tpu.memory_space<vmem>>) attributes {dimension_semantics = [#tpu.dimension_semantics<parallel>], iteration_bounds = array<i64: 1>, scalar_prefetch = 0 : i64, scratch_operands = 0 : i64, tpu.core_type = #tpu.core_type<tc>, window_params = [{transform_indices = @transform_0, window_bounds = array<i64: 1, 128>}, {transform_indices = @transform_1, window_bounds = array<i64: 5>}, {transform_indices = @transform_2, window_bounds = array<i64: 5>}, {transform_indices = @transform_3, window_bounds = array<i64: 5, 5>}, {transform_indices = @transform_4, window_bounds = array<i64: 5>}, {transform_indices = @transform_5, window_bounds = array<i64: 5>}, {transform_indices = @transform_6, window_bounds = array<i64: 1>}, {transform_indices = @transform_7, window_bounds = array<i64: 1, 128>}]} {
    %c0 = arith.constant 0 : index
    %c0_0 = arith.constant 0 : index
    %0 = vector.load %arg1[%c0, %c0_0] : memref<1x128xf32, #tpu.memory_space<vmem>>, vector<1x128xf32>
    %c0_1 = arith.constant 0 : index
    %1 = memref.load %arg3[%c0_1] : memref<5xf32, #tpu.memory_space<smem>>
    %c0_2 = arith.constant 0 : index
    %2 = memref.load %arg2[%c0_2] : memref<5xf32, #tpu.memory_space<smem>>
    %3 = vector.broadcast %2 : f32 to vector<1x128xf32>
    %4 = arith.mulf %3, %0 : vector<1x128xf32>
    %5 = vector.broadcast %1 : f32 to vector<1x128xf32>
    %6 = arith.addf %5, %4 : vector<1x128xf32>
    %cst = arith.constant 0.000000e+00 : f32
    %7 = vector.broadcast %cst : f32 to vector<1x128xf32>
    %8 = arith.maximumf %6, %7 : vector<1x128xf32>
    %c1 = arith.constant 1 : index
    %9 = memref.load %arg3[%c1] : memref<5xf32, #tpu.memory_space<smem>>
    %c1_3 = arith.constant 1 : index
    %10 = memref.load %arg2[%c1_3] : memref<5xf32, #tpu.memory_space<smem>>
    %11 = vector.broadcast %10 : f32 to vector<1x128xf32>
    %12 = arith.mulf %11, %0 : vector<1x128xf32>
    %13 = vector.broadcast %9 : f32 to vector<1x128xf32>
    %14 = arith.addf %13, %12 : vector<1x128xf32>
    %cst_4 = arith.constant 0.000000e+00 : f32
    %15 = vector.broadcast %cst_4 : f32 to vector<1x128xf32>
    %16 = arith.maximumf %14, %15 : vector<1x128xf32>
    %c2 = arith.constant 2 : index
    %17 = memref.load %arg3[%c2] : memref<5xf32, #tpu.memory_space<smem>>
    %c2_5 = arith.constant 2 : index
    %18 = memref.load %arg2[%c2_5] : memref<5xf32, #tpu.memory_space<smem>>
    %19 = vector.broadcast %18 : f32 to vector<1x128xf32>
    %20 = arith.mulf %19, %0 : vector<1x128xf32>
    %21 = vector.broadcast %17 : f32 to vector<1x128xf32>
    %22 = arith.addf %21, %20 : vector<1x128xf32>
    %cst_6 = arith.constant 0.000000e+00 : f32
    %23 = vector.broadcast %cst_6 : f32 to vector<1x128xf32>
    %24 = arith.maximumf %22, %23 : vector<1x128xf32>
    %c3 = arith.constant 3 : index
    %25 = memref.load %arg3[%c3] : memref<5xf32, #tpu.memory_space<smem>>
    %c3_7 = arith.constant 3 : index
    %26 = memref.load %arg2[%c3_7] : memref<5xf32, #tpu.memory_space<smem>>
    %27 = vector.broadcast %26 : f32 to vector<1x128xf32>
    %28 = arith.mulf %27, %0 : vector<1x128xf32>
    %29 = vector.broadcast %25 : f32 to vector<1x128xf32>
    %30 = arith.addf %29, %28 : vector<1x128xf32>
    %cst_8 = arith.constant 0.000000e+00 : f32
    %31 = vector.broadcast %cst_8 : f32 to vector<1x128xf32>
    %32 = arith.maximumf %30, %31 : vector<1x128xf32>
    %c4 = arith.constant 4 : index
    %33 = memref.load %arg3[%c4] : memref<5xf32, #tpu.memory_space<smem>>
    %c4_9 = arith.constant 4 : index
    %34 = memref.load %arg2[%c4_9] : memref<5xf32, #tpu.memory_space<smem>>
    %35 = vector.broadcast %34 : f32 to vector<1x128xf32>
    %36 = arith.mulf %35, %0 : vector<1x128xf32>
    %37 = vector.broadcast %33 : f32 to vector<1x128xf32>
    %38 = arith.addf %37, %36 : vector<1x128xf32>
    %cst_10 = arith.constant 0.000000e+00 : f32
    %39 = vector.broadcast %cst_10 : f32 to vector<1x128xf32>
    %40 = arith.maximumf %38, %39 : vector<1x128xf32>
    %c0_11 = arith.constant 0 : index
    %41 = memref.load %arg5[%c0_11] : memref<5xf32, #tpu.memory_space<smem>>
    %c0_12 = arith.constant 0 : index
    %c0_13 = arith.constant 0 : index
    %42 = memref.load %arg4[%c0_12, %c0_13] : memref<5x5xf32, #tpu.memory_space<smem>>
    %43 = vector.broadcast %42 : f32 to vector<1x128xf32>
    %44 = arith.mulf %43, %8 : vector<1x128xf32>
    %45 = vector.broadcast %41 : f32 to vector<1x128xf32>
    %46 = arith.addf %45, %44 : vector<1x128xf32>
    %c0_14 = arith.constant 0 : index
    %c1_15 = arith.constant 1 : index
    %47 = memref.load %arg4[%c0_14, %c1_15] : memref<5x5xf32, #tpu.memory_space<smem>>
    %48 = vector.broadcast %47 : f32 to vector<1x128xf32>
    %49 = arith.mulf %48, %16 : vector<1x128xf32>
    %50 = arith.addf %46, %49 : vector<1x128xf32>
    %c0_16 = arith.constant 0 : index
    %c2_17 = arith.constant 2 : index
    %51 = memref.load %arg4[%c0_16, %c2_17] : memref<5x5xf32, #tpu.memory_space<smem>>
    %52 = vector.broadcast %51 : f32 to vector<1x128xf32>
    %53 = arith.mulf %52, %24 : vector<1x128xf32>
    %54 = arith.addf %50, %53 : vector<1x128xf32>
    %c0_18 = arith.constant 0 : index
    %c3_19 = arith.constant 3 : index
    %55 = memref.load %arg4[%c0_18, %c3_19] : memref<5x5xf32, #tpu.memory_space<smem>>
    %56 = vector.broadcast %55 : f32 to vector<1x128xf32>
    %57 = arith.mulf %56, %32 : vector<1x128xf32>
    %58 = arith.addf %54, %57 : vector<1x128xf32>
    %c0_20 = arith.constant 0 : index
    %c4_21 = arith.constant 4 : index
    %59 = memref.load %arg4[%c0_20, %c4_21] : memref<5x5xf32, #tpu.memory_space<smem>>
    %60 = vector.broadcast %59 : f32 to vector<1x128xf32>
    %61 = arith.mulf %60, %40 : vector<1x128xf32>
    %62 = arith.addf %58, %61 : vector<1x128xf32>
    %cst_22 = arith.constant 0.000000e+00 : f32
    %63 = vector.broadcast %cst_22 : f32 to vector<1x128xf32>
    %64 = arith.maximumf %62, %63 : vector<1x128xf32>
    %c1_23 = arith.constant 1 : index
    %65 = memref.load %arg5[%c1_23] : memref<5xf32, #tpu.memory_space<smem>>
    %c1_24 = arith.constant 1 : index
    %c0_25 = arith.constant 0 : index
    %66 = memref.load %arg4[%c1_24, %c0_25] : memref<5x5xf32, #tpu.memory_space<smem>>
    %67 = vector.broadcast %66 : f32 to vector<1x128xf32>
    %68 = arith.mulf %67, %8 : vector<1x128xf32>
    %69 = vector.broadcast %65 : f32 to vector<1x128xf32>
    %70 = arith.addf %69, %68 : vector<1x128xf32>
    %c1_26 = arith.constant 1 : index
    %c1_27 = arith.constant 1 : index
    %71 = memref.load %arg4[%c1_26, %c1_27] : memref<5x5xf32, #tpu.memory_space<smem>>
    %72 = vector.broadcast %71 : f32 to vector<1x128xf32>
    %73 = arith.mulf %72, %16 : vector<1x128xf32>
    %74 = arith.addf %70, %73 : vector<1x128xf32>
    %c1_28 = arith.constant 1 : index
    %c2_29 = arith.constant 2 : index
    %75 = memref.load %arg4[%c1_28, %c2_29] : memref<5x5xf32, #tpu.memory_space<smem>>
    %76 = vector.broadcast %75 : f32 to vector<1x128xf32>
    %77 = arith.mulf %76, %24 : vector<1x128xf32>
    %78 = arith.addf %74, %77 : vector<1x128xf32>
    %c1_30 = arith.constant 1 : index
    %c3_31 = arith.constant 3 : index
    %79 = memref.load %arg4[%c1_30, %c3_31] : memref<5x5xf32, #tpu.memory_space<smem>>
    %80 = vector.broadcast %79 : f32 to vector<1x128xf32>
    %81 = arith.mulf %80, %32 : vector<1x128xf32>
    %82 = arith.addf %78, %81 : vector<1x128xf32>
    %c1_32 = arith.constant 1 : index
    %c4_33 = arith.constant 4 : index
    %83 = memref.load %arg4[%c1_32, %c4_33] : memref<5x5xf32, #tpu.memory_space<smem>>
    %84 = vector.broadcast %83 : f32 to vector<1x128xf32>
    %85 = arith.mulf %84, %40 : vector<1x128xf32>
    %86 = arith.addf %82, %85 : vector<1x128xf32>
    %cst_34 = arith.constant 0.000000e+00 : f32
    %87 = vector.broadcast %cst_34 : f32 to vector<1x128xf32>
    %88 = arith.maximumf %86, %87 : vector<1x128xf32>
    %c2_35 = arith.constant 2 : index
    %89 = memref.load %arg5[%c2_35] : memref<5xf32, #tpu.memory_space<smem>>
    %c2_36 = arith.constant 2 : index
    %c0_37 = arith.constant 0 : index
    %90 = memref.load %arg4[%c2_36, %c0_37] : memref<5x5xf32, #tpu.memory_space<smem>>
    %91 = vector.broadcast %90 : f32 to vector<1x128xf32>
    %92 = arith.mulf %91, %8 : vector<1x128xf32>
    %93 = vector.broadcast %89 : f32 to vector<1x128xf32>
    %94 = arith.addf %93, %92 : vector<1x128xf32>
    %c2_38 = arith.constant 2 : index
    %c1_39 = arith.constant 1 : index
    %95 = memref.load %arg4[%c2_38, %c1_39] : memref<5x5xf32, #tpu.memory_space<smem>>
    %96 = vector.broadcast %95 : f32 to vector<1x128xf32>
    %97 = arith.mulf %96, %16 : vector<1x128xf32>
    %98 = arith.addf %94, %97 : vector<1x128xf32>
    %c2_40 = arith.constant 2 : index
    %c2_41 = arith.constant 2 : index
    %99 = memref.load %arg4[%c2_40, %c2_41] : memref<5x5xf32, #tpu.memory_space<smem>>
    %100 = vector.broadcast %99 : f32 to vector<1x128xf32>
    %101 = arith.mulf %100, %24 : vector<1x128xf32>
    %102 = arith.addf %98, %101 : vector<1x128xf32>
    %c2_42 = arith.constant 2 : index
    %c3_43 = arith.constant 3 : index
    %103 = memref.load %arg4[%c2_42, %c3_43] : memref<5x5xf32, #tpu.memory_space<smem>>
    %104 = vector.broadcast %103 : f32 to vector<1x128xf32>
    %105 = arith.mulf %104, %32 : vector<1x128xf32>
    %106 = arith.addf %102, %105 : vector<1x128xf32>
    %c2_44 = arith.constant 2 : index
    %c4_45 = arith.constant 4 : index
    %107 = memref.load %arg4[%c2_44, %c4_45] : memref<5x5xf32, #tpu.memory_space<smem>>
    %108 = vector.broadcast %107 : f32 to vector<1x128xf32>
    %109 = arith.mulf %108, %40 : vector<1x128xf32>
    %110 = arith.addf %106, %109 : vector<1x128xf32>
    %cst_46 = arith.constant 0.000000e+00 : f32
    %111 = vector.broadcast %cst_46 : f32 to vector<1x128xf32>
    %112 = arith.maximumf %110, %111 : vector<1x128xf32>
    %c3_47 = arith.constant 3 : index
    %113 = memref.load %arg5[%c3_47] : memref<5xf32, #tpu.memory_space<smem>>
    %c3_48 = arith.constant 3 : index
    %c0_49 = arith.constant 0 : index
    %114 = memref.load %arg4[%c3_48, %c0_49] : memref<5x5xf32, #tpu.memory_space<smem>>
    %115 = vector.broadcast %114 : f32 to vector<1x128xf32>
    %116 = arith.mulf %115, %8 : vector<1x128xf32>
    %117 = vector.broadcast %113 : f32 to vector<1x128xf32>
    %118 = arith.addf %117, %116 : vector<1x128xf32>
    %c3_50 = arith.constant 3 : index
    %c1_51 = arith.constant 1 : index
    %119 = memref.load %arg4[%c3_50, %c1_51] : memref<5x5xf32, #tpu.memory_space<smem>>
    %120 = vector.broadcast %119 : f32 to vector<1x128xf32>
    %121 = arith.mulf %120, %16 : vector<1x128xf32>
    %122 = arith.addf %118, %121 : vector<1x128xf32>
    %c3_52 = arith.constant 3 : index
    %c2_53 = arith.constant 2 : index
    %123 = memref.load %arg4[%c3_52, %c2_53] : memref<5x5xf32, #tpu.memory_space<smem>>
    %124 = vector.broadcast %123 : f32 to vector<1x128xf32>
    %125 = arith.mulf %124, %24 : vector<1x128xf32>
    %126 = arith.addf %122, %125 : vector<1x128xf32>
    %c3_54 = arith.constant 3 : index
    %c3_55 = arith.constant 3 : index
    %127 = memref.load %arg4[%c3_54, %c3_55] : memref<5x5xf32, #tpu.memory_space<smem>>
    %128 = vector.broadcast %127 : f32 to vector<1x128xf32>
    %129 = arith.mulf %128, %32 : vector<1x128xf32>
    %130 = arith.addf %126, %129 : vector<1x128xf32>
    %c3_56 = arith.constant 3 : index
    %c4_57 = arith.constant 4 : index
    %131 = memref.load %arg4[%c3_56, %c4_57] : memref<5x5xf32, #tpu.memory_space<smem>>
    %132 = vector.broadcast %131 : f32 to vector<1x128xf32>
    %133 = arith.mulf %132, %40 : vector<1x128xf32>
    %134 = arith.addf %130, %133 : vector<1x128xf32>
    %cst_58 = arith.constant 0.000000e+00 : f32
    %135 = vector.broadcast %cst_58 : f32 to vector<1x128xf32>
    %136 = arith.maximumf %134, %135 : vector<1x128xf32>
    %c4_59 = arith.constant 4 : index
    %137 = memref.load %arg5[%c4_59] : memref<5xf32, #tpu.memory_space<smem>>
    %c4_60 = arith.constant 4 : index
    %c0_61 = arith.constant 0 : index
    %138 = memref.load %arg4[%c4_60, %c0_61] : memref<5x5xf32, #tpu.memory_space<smem>>
    %139 = vector.broadcast %138 : f32 to vector<1x128xf32>
    %140 = arith.mulf %139, %8 : vector<1x128xf32>
    %141 = vector.broadcast %137 : f32 to vector<1x128xf32>
    %142 = arith.addf %141, %140 : vector<1x128xf32>
    %c4_62 = arith.constant 4 : index
    %c1_63 = arith.constant 1 : index
    %143 = memref.load %arg4[%c4_62, %c1_63] : memref<5x5xf32, #tpu.memory_space<smem>>
    %144 = vector.broadcast %143 : f32 to vector<1x128xf32>
    %145 = arith.mulf %144, %16 : vector<1x128xf32>
    %146 = arith.addf %142, %145 : vector<1x128xf32>
    %c4_64 = arith.constant 4 : index
    %c2_65 = arith.constant 2 : index
    %147 = memref.load %arg4[%c4_64, %c2_65] : memref<5x5xf32, #tpu.memory_space<smem>>
    %148 = vector.broadcast %147 : f32 to vector<1x128xf32>
    %149 = arith.mulf %148, %24 : vector<1x128xf32>
    %150 = arith.addf %146, %149 : vector<1x128xf32>
    %c4_66 = arith.constant 4 : index
    %c3_67 = arith.constant 3 : index
    %151 = memref.load %arg4[%c4_66, %c3_67] : memref<5x5xf32, #tpu.memory_space<smem>>
    %152 = vector.broadcast %151 : f32 to vector<1x128xf32>
    %153 = arith.mulf %152, %32 : vector<1x128xf32>
    %154 = arith.addf %150, %153 : vector<1x128xf32>
    %c4_68 = arith.constant 4 : index
    %c4_69 = arith.constant 4 : index
    %155 = memref.load %arg4[%c4_68, %c4_69] : memref<5x5xf32, #tpu.memory_space<smem>>
    %156 = vector.broadcast %155 : f32 to vector<1x128xf32>
    %157 = arith.mulf %156, %40 : vector<1x128xf32>
    %158 = arith.addf %154, %157 : vector<1x128xf32>
    %cst_70 = arith.constant 0.000000e+00 : f32
    %159 = vector.broadcast %cst_70 : f32 to vector<1x128xf32>
    %160 = arith.maximumf %158, %159 : vector<1x128xf32>
    %c0_71 = arith.constant 0 : index
    %161 = memref.load %arg7[%c0_71] : memref<1xf32, #tpu.memory_space<smem>>
    %c0_72 = arith.constant 0 : index
    %162 = memref.load %arg6[%c0_72] : memref<5xf32, #tpu.memory_space<smem>>
    %163 = vector.broadcast %162 : f32 to vector<1x128xf32>
    %164 = arith.mulf %163, %64 : vector<1x128xf32>
    %165 = vector.broadcast %161 : f32 to vector<1x128xf32>
    %166 = arith.addf %165, %164 : vector<1x128xf32>
    %c1_73 = arith.constant 1 : index
    %167 = memref.load %arg6[%c1_73] : memref<5xf32, #tpu.memory_space<smem>>
    %168 = vector.broadcast %167 : f32 to vector<1x128xf32>
    %169 = arith.mulf %168, %88 : vector<1x128xf32>
    %170 = arith.addf %166, %169 : vector<1x128xf32>
    %c2_74 = arith.constant 2 : index
    %171 = memref.load %arg6[%c2_74] : memref<5xf32, #tpu.memory_space<smem>>
    %172 = vector.broadcast %171 : f32 to vector<1x128xf32>
    %173 = arith.mulf %172, %112 : vector<1x128xf32>
    %174 = arith.addf %170, %173 : vector<1x128xf32>
    %c3_75 = arith.constant 3 : index
    %175 = memref.load %arg6[%c3_75] : memref<5xf32, #tpu.memory_space<smem>>
    %176 = vector.broadcast %175 : f32 to vector<1x128xf32>
    %177 = arith.mulf %176, %136 : vector<1x128xf32>
    %178 = arith.addf %174, %177 : vector<1x128xf32>
    %c4_76 = arith.constant 4 : index
    %179 = memref.load %arg6[%c4_76] : memref<5xf32, #tpu.memory_space<smem>>
    %180 = vector.broadcast %179 : f32 to vector<1x128xf32>
    %181 = arith.mulf %180, %160 : vector<1x128xf32>
    %182 = arith.addf %178, %181 : vector<1x128xf32>
    %c0_77 = arith.constant 0 : index
    %c0_78 = arith.constant 0 : index
    %183 = vector.load %arg8[%c0_77, %c0_78] : memref<1x128xf32, #tpu.memory_space<vmem>>, vector<1x128xf32>
    tpu.vector_store %arg8[%c0_77, %c0_78], %182 {strides = array<i32>} : memref<1x128xf32, #tpu.memory_space<vmem>>, vector<1x128xf32>,
    return
  }
  func.func @transform_0(%arg0: i32) -> (i32, i32) {
    %c0_i32 = arith.constant 0 : i32
    %c0_i32_0 = arith.constant 0 : i32
    return %c0_i32, %arg0 : i32, i32
  }
  func.func @transform_1(%arg0: i32) -> i32 {
    %c0_i32 = arith.constant 0 : i32
    %c0_i32_0 = arith.constant 0 : i32
    return %c0_i32 : i32
  }
  func.func @transform_2(%arg0: i32) -> i32 {
    %c0_i32 = arith.constant 0 : i32
    %c0_i32_0 = arith.constant 0 : i32
    return %c0_i32 : i32
  }
  func.func @transform_3(%arg0: i32) -> (i32, i32) {
    %c0_i32 = arith.constant 0 : i32
    %c0_i32_0 = arith.constant 0 : i32
    %c0_i32_1 = arith.constant 0 : i32
    return %c0_i32, %c0_i32_0 : i32, i32
  }
  func.func @transform_4(%arg0: i32) -> i32 {
    %c0_i32 = arith.constant 0 : i32
    %c0_i32_0 = arith.constant 0 : i32
    return %c0_i32 : i32
  }
  func.func @transform_5(%arg0: i32) -> i32 {
    %c0_i32 = arith.constant 0 : i32
    %c0_i32_0 = arith.constant 0 : i32
    return %c0_i32 : i32
  }
  func.func @transform_6(%arg0: i32) -> i32 {
    %c0_i32 = arith.constant 0 : i32
    %c0_i32_0 = arith.constant 0 : i32
    return %c0_i32 : i32
  }
  func.func @transform_7(%arg0: i32) -> (i32, i32) {
    %c0_i32 = arith.constant 0 : i32
    %c0_i32_0 = arith.constant 0 : i32
    return %c0_i32, %arg0 : i32, i32
  }
}

</mosaic_0001>

<llo_original>
// kernel: tpu_custom_call.1
$region0: #{tpu_custom_call.1}
  #allocation0 [shape = 'u32[]', space=smem, size = 0x4, offset = 0x4, fixed_abs, tag = 'smem constant byte address 0x4 - core index']
  #allocation1 [shape = 'u32[72,128]{1,0:T(1,128)}', space=vmem, size = 0x9000, scoped, tag = 'internal scratch']
  #allocation2 [shape = 'f32[1]{0:T(128)S(6)}', space=smem, size = 0x200, scoped, tag = 'scoped memory for tpu_custom_call.1']
  %s0 = inlined_call_operand.vmem [shape: f32[1,128], index: 0, kind: input, shape index: {}]
  %s1 = inlined_call_operand.vmem [shape: f32[5], index: 1, kind: input, shape index: {}]
  %s2 = inlined_call_operand.vmem [shape: f32[5], index: 2, kind: input, shape index: {}]
  %s3 = inlined_call_operand.hbm [shape: f32[5,5], index: 3, kind: input, shape index: {}]
  %s4 = inlined_call_operand.vmem [shape: f32[5], index: 4, kind: input, shape index: {}]
  %s5 = inlined_call_operand.vmem [shape: f32[5], index: 5, kind: input, shape index: {}]
  %s6 = inlined_call_operand.<no memory space> [shape: f32[1], index: 6, kind: input, shape index: {}]
  %s7 = inlined_call_operand.hbm [shape: f32[1,128], index: 7, kind: output, shape index: {}]
  %s8 = sld [smem:[#allocation0]]
  $region58: #{tpu_custom_call.1} parent=0
    _
  %s10 = ssub.s32 1, %s8
  %s11 = scalar_select 0, %s10, %s8
  %12 = sst [smem:[#allocation2]] %s6
  $region1: #{tpu_custom_call.1} parent=0
    #allocation3 [shape = 'u8[512]{0}', space=smem, size = 0x200, scoped, tag = 'input window, operand 1, single buffered']
    #allocation4 [shape = 's32[1]{0}', space=sflag, size = 0x4, scoped, tag = 'scoped memory for tpu_custom_call.1']
    #allocation5 [shape = 's32[1]{0}', space=sflag, size = 0x4, scoped, tag = 'scoped memory for tpu_custom_call.1']
    #allocation6 [shape = 's32[1]{0}', space=sflag, size = 0x4, scoped, tag = 'scoped memory for tpu_custom_call.1']
    #allocation7 [shape = 'u8[512]{0}', space=smem, size = 0x200, scoped, tag = 'input window, operand 2, single buffered']
    #allocation8 [shape = 's32[1]{0}', space=sflag, size = 0x4, scoped, tag = 'scoped memory for tpu_custom_call.1']
    #allocation9 [shape = 'u8[4096]{0}', space=smem, size = 0x1000, scoped, tag = 'input window, operand 3, single buffered']
    #allocation10 [shape = 'u8[512]{0}', space=smem, size = 0x200, scoped, tag = 'input window, operand 4, single buffered']
    #allocation11 [shape = 'u8[512]{0}', space=smem, size = 0x200, scoped, tag = 'input window, operand 5, single buffered']
    #allocation12 [shape = 's32[1]{0}', space=sflag, size = 0x4, scoped, tag = 'scoped memory for tpu_custom_call.1']
    #allocation13 [shape = 'u8[512]{0}', space=vmem, size = 0x400, scoped, tag = 'output window, operand 0, single buffered']
    %13 = vsyncpa [#allocation6], 0
    %14 = vsyncpa [#allocation8], 0
    %15 = vsyncpa [#allocation5], 0
    %16 = vsyncpa [#allocation12], 0
    %17 = vsyncpa [#allocation4], 0
    // Predicated region
    $region2: #{tpu_custom_call.1} parent=1 // pred_check
      _
    $region3: #{tpu_custom_call.1} parent=1 // pred_check_branch
      %19 = sbr.rel (0) target = $region5
    $region4: #{tpu_custom_call.1} parent=1 // pred_region
      _
    $region5: #{tpu_custom_call.1} parent=1 // pred_fallthru
      _
    // Predicated region
    $region6: #{tpu_custom_call.1} parent=1 // pred_check
      _
    $region7: #{tpu_custom_call.1} parent=1 // pred_check_branch
      %21 = sbr.rel (0) target = $region9
    $region8: #{tpu_custom_call.1} parent=1 // pred_region
      %23 = vsyncadd [#allocation6], 0
      %s25 = sshll.u32 %s1, 4
      %s26 = int_to_ptr.vmem [resolvable:$true] %s25
      %28 = dma.vmem_to_smem %s26, 16, [#allocation3], [#allocation6]
    $region9: #{tpu_custom_call.1} parent=1 // pred_fallthru
      _
    // Predicated region
    $region10: #{tpu_custom_call.1} parent=1 // pred_check
      _
    $region11: #{tpu_custom_call.1} parent=1 // pred_check_branch
      %30 = sbr.rel (0) target = $region13
    $region12: #{tpu_custom_call.1} parent=1 // pred_region
      %32 = vsyncadd [#allocation8], 0
      %s34 = sshll.u32 %s2, 4
      %s35 = int_to_ptr.vmem [resolvable:$true] %s34
      %37 = dma.vmem_to_smem %s35, 16, [#allocation7], [#allocation8]
    $region13: #{tpu_custom_call.1} parent=1 // pred_fallthru
      _
    // Predicated region
    $region14: #{tpu_custom_call.1} parent=1 // pred_check
      _
    $region15: #{tpu_custom_call.1} parent=1 // pred_check_branch
      %39 = sbr.rel (0) target = $region17
    $region16: #{tpu_custom_call.1} parent=1 // pred_region
      %41 = vsyncadd [#allocation5], 0
      %s43 = sshll.u32 %s3, 4
      %s44 = int_to_ptr.hbm [resolvable:$true] %s43
      %46 = dma.hbm_to_smem %s44, 128, [#allocation9], [#allocation5]
    $region17: #{tpu_custom_call.1} parent=1 // pred_fallthru
      _
    // Predicated region
    $region18: #{tpu_custom_call.1} parent=1 // pred_check
      _
    $region19: #{tpu_custom_call.1} parent=1 // pred_check_branch
      %48 = sbr.rel (0) target = $region21
    $region20: #{tpu_custom_call.1} parent=1 // pred_region
      %50 = vsyncadd [#allocation8], 0
      %s52 = sshll.u32 %s4, 4
      %s53 = int_to_ptr.vmem [resolvable:$true] %s52
      %55 = dma.vmem_to_smem %s53, 16, [#allocation10], [#allocation8]
    $region21: #{tpu_custom_call.1} parent=1 // pred_fallthru
      _
    // Predicated region
    $region22: #{tpu_custom_call.1} parent=1 // pred_check
      _
    $region23: #{tpu_custom_call.1} parent=1 // pred_check_branch
      %57 = sbr.rel (0) target = $region25
    $region24: #{tpu_custom_call.1} parent=1 // pred_region
      %59 = vsyncadd [#allocation12], 0
      %s61 = sshll.u32 %s5, 4
      %s62 = int_to_ptr.vmem [resolvable:$true] %s61
      %64 = dma.vmem_to_smem %s62, 16, [#allocation11], [#allocation12]
    $region25: #{tpu_custom_call.1} parent=1 // pred_fallthru
      _
    // Predicated region
    $region26: #{tpu_custom_call.1} parent=1 // pred_check
      _
    $region27: #{tpu_custom_call.1} parent=1 // pred_check_branch
      %66 = sbr.rel (0) target = $region29
    $region28: #{tpu_custom_call.1} parent=1 // pred_region
      _
    $region29: #{tpu_custom_call.1} parent=1 // pred_fallthru
      _
    // Predicated region
    $region30: #{tpu_custom_call.1} parent=1 // pred_check
      _
    $region31: #{tpu_custom_call.1} parent=1 // pred_check_branch
      %68 = sbr.rel (0) target = $region33
    $region32: #{tpu_custom_call.1} parent=1 // pred_region
      %70 = dma.done [#allocation6], 16
    $region33: #{tpu_custom_call.1} parent=1 // pred_fallthru
      _
    // Predicated region
    $region34: #{tpu_custom_call.1} parent=1 // pred_check
      _
    $region35: #{tpu_custom_call.1} parent=1 // pred_check_branch
      %72 = sbr.rel (0) target = $region37
    $region36: #{tpu_custom_call.1} parent=1 // pred_region
      %74 = dma.done [#allocation8], 16
    $region37: #{tpu_custom_call.1} parent=1 // pred_fallthru
      _
    // Predicated region
    $region38: #{tpu_custom_call.1} parent=1 // pred_check
      _
    $region39: #{tpu_custom_call.1} parent=1 // pred_check_branch
      %76 = sbr.rel (0) target = $region41
    $region40: #{tpu_custom_call.1} parent=1 // pred_region
      %78 = dma.done [#allocation5], 128
    $region41: #{tpu_custom_call.1} parent=1 // pred_fallthru
      _
    // Predicated region
    $region42: #{tpu_custom_call.1} parent=1 // pred_check
      _
    $region43: #{tpu_custom_call.1} parent=1 // pred_check_branch
      %80 = sbr.rel (0) target = $region45
    $region44: #{tpu_custom_call.1} parent=1 // pred_region
      %82 = dma.done [#allocation8], 16
    $region45: #{tpu_custom_call.1} parent=1 // pred_fallthru
      _
    // Predicated region
    $region46: #{tpu_custom_call.1} parent=1 // pred_check
      _
    $region47: #{tpu_custom_call.1} parent=1 // pred_check_branch
      %84 = sbr.rel (0) target = $region49
    $region48: #{tpu_custom_call.1} parent=1 // pred_region
      %86 = dma.done [#allocation12], 16
    $region49: #{tpu_custom_call.1} parent=1 // pred_fallthru
      _
    %87 = sfence
    %v88 = vld [vmem:[%s0] sm:$0x1]
    %s89 = sld [smem:[#allocation7]]
    %s90 = sld [smem:[#allocation3]]
    %v91 = vstv %s90
    %v92 = vmul.f32 %v91, %v88
    %v93 = vstv %s89
    %v94 = vadd.f32 %v93, %v92
    %v95 = vmax.f32 %v94, 0.0
    %s96 = sld [smem:[#allocation7 + $0x1]]
    %s97 = sld [smem:[#allocation3 + $0x1]]
    %v98 = vstv %s97
    %v99 = vmul.f32 %v98, %v88
    %v100 = vstv %s96
    %v101 = vadd.f32 %v100, %v99
    %v102 = vmax.f32 %v101, 0.0
    %s103 = sld [smem:[#allocation7 + $0x2]]
    %s104 = sld [smem:[#allocation3 + $0x2]]
    %v105 = vstv %s104
    %v106 = vmul.f32 %v105, %v88
    %v107 = vstv %s103
    %v108 = vadd.f32 %v107, %v106
    %v109 = vmax.f32 %v108, 0.0
    %s110 = sld [smem:[#allocation7 + $0x3]]
    %s111 = sld [smem:[#allocation3 + $0x3]]
    %v112 = vstv %s111
    %v113 = vmul.f32 %v112, %v88
    %v114 = vstv %s110
    %v115 = vadd.f32 %v114, %v113
    %v116 = vmax.f32 %v115, 0.0
    %s117 = sld [smem:[#allocation7 + $0x4]]
    %s118 = sld [smem:[#allocation3 + $0x4]]
    %v119 = vstv %s118
    %v120 = vmul.f32 %v119, %v88
    %v121 = vstv %s117
    %v122 = vadd.f32 %v121, %v120
    %v123 = vmax.f32 %v122, 0.0
    %s124 = sld [smem:[#allocation10]]
    %s125 = sld [smem:[#allocation9]]
    %v126 = vstv %s125
    %v127 = vmul.f32 %v126, %v95
    %v128 = vstv %s124
    %v129 = vadd.f32 %v128, %v127
    %s130 = sld [smem:[#allocation9 + $0x1]]
    %v131 = vstv %s130
    %v132 = vmul.f32 %v131, %v102
    %v133 = vadd.f32 %v129, %v132
    %s134 = sld [smem:[#allocation9 + $0x2]]
    %v135 = vstv %s134
    %v136 = vmul.f32 %v135, %v109
    %v137 = vadd.f32 %v133, %v136
    %s138 = sld [smem:[#allocation9 + $0x3]]
    %v139 = vstv %s138
    %v140 = vmul.f32 %v139, %v116
    %v141 = vadd.f32 %v137, %v140
    %s142 = sld [smem:[#allocation9 + $0x4]]
    %v143 = vstv %s142
    %v144 = vmul.f32 %v143, %v123
    %v145 = vadd.f32 %v141, %v144
    %v146 = vmax.f32 %v145, 0.0
    %s147 = sld [smem:[#allocation10 + $0x1]]
    %s148 = sld [smem:[#allocation9 + $0x80]]
    %v149 = vstv %s148
    %v150 = vmul.f32 %v149, %v95
    %v151 = vstv %s147
    %v152 = vadd.f32 %v151, %v150
    %s153 = sld [smem:[#allocation9 + $0x81]]
    %v154 = vstv %s153
    %v155 = vmul.f32 %v154, %v102
    %v156 = vadd.f32 %v152, %v155
    %s157 = sld [smem:[#allocation9 + $0x82]]
    %v158 = vstv %s157
    %v159 = vmul.f32 %v158, %v109
    %v160 = vadd.f32 %v156, %v159
    %s161 = sld [smem:[#allocation9 + $0x83]]
    %v162 = vstv %s161
    %v163 = vmul.f32 %v162, %v116
    %v164 = vadd.f32 %v160, %v163
    %s165 = sld [smem:[#allocation9 + $0x84]]
    %v166 = vstv %s165
    %v167 = vmul.f32 %v166, %v123
    %v168 = vadd.f32 %v164, %v167
    %v169 = vmax.f32 %v168, 0.0
    %s170 = sld [smem:[#allocation10 + $0x2]]
    %s171 = sld [smem:[#allocation9 + $0x100]]
    %v172 = vstv %s171
    %v173 = vmul.f32 %v172, %v95
    %v174 = vstv %s170
    %v175 = vadd.f32 %v174, %v173
    %s176 = sld [smem:[#allocation9 + $0x101]]
    %v177 = vstv %s176
    %v178 = vmul.f32 %v177, %v102
    %v179 = vadd.f32 %v175, %v178
    %s180 = sld [smem:[#allocation9 + $0x102]]
    %v181 = vstv %s180
    %v182 = vmul.f32 %v181, %v109
    %v183 = vadd.f32 %v179, %v182
    %s184 = sld [smem:[#allocation9 + $0x103]]
    %v185 = vstv %s184
    %v186 = vmul.f32 %v185, %v116
    %v187 = vadd.f32 %v183, %v186
    %s188 = sld [smem:[#allocation9 + $0x104]]
    %v189 = vstv %s188
    %v190 = vmul.f32 %v189, %v123
    %v191 = vadd.f32 %v187, %v190
    %v192 = vmax.f32 %v191, 0.0
    %s193 = sld [smem:[#allocation10 + $0x3]]
    %s194 = sld [smem:[#allocation9 + $0x180]]
    %v195 = vstv %s194
    %v196 = vmul.f32 %v195, %v95
    %v197 = vstv %s193
    %v198 = vadd.f32 %v197, %v196
    %s199 = sld [smem:[#allocation9 + $0x181]]
    %v200 = vstv %s199
    %v201 = vmul.f32 %v200, %v102
    %v202 = vadd.f32 %v198, %v201
    %s203 = sld [smem:[#allocation9 + $0x182]]
    %v204 = vstv %s203
    %v205 = vmul.f32 %v204, %v109
    %v206 = vadd.f32 %v202, %v205
    %s207 = sld [smem:[#allocation9 + $0x183]]
    %v208 = vstv %s207
    %v209 = vmul.f32 %v208, %v116
    %v210 = vadd.f32 %v206, %v209
    %s211 = sld [smem:[#allocation9 + $0x184]]
    %v212 = vstv %s211
    %v213 = vmul.f32 %v212, %v123
    %v214 = vadd.f32 %v210, %v213
    %v215 = vmax.f32 %v214, 0.0
    %s216 = sld [smem:[#allocation10 + $0x4]]
    %s217 = sld [smem:[#allocation9 + $0x200]]
    %v218 = vstv %s217
    %v219 = vmul.f32 %v218, %v95
    %v220 = vstv %s216
    %v221 = vadd.f32 %v220, %v219
    %s222 = sld [smem:[#allocation9 + $0x201]]
    %v223 = vstv %s222
    %v224 = vmul.f32 %v223, %v102
    %v225 = vadd.f32 %v221, %v224
    %s226 = sld [smem:[#allocation9 + $0x202]]
    %v227 = vstv %s226
    %v228 = vmul.f32 %v227, %v109
    %v229 = vadd.f32 %v225, %v228
    %s230 = sld [smem:[#allocation9 + $0x203]]
    %v231 = vstv %s230
    %v232 = vmul.f32 %v231, %v116
    %v233 = vadd.f32 %v229, %v232
    %s234 = sld [smem:[#allocation9 + $0x204]]
    %v235 = vstv %s234
    %v236 = vmul.f32 %v235, %v123
    %v237 = vadd.f32 %v233, %v236
    %v238 = vmax.f32 %v237, 0.0
    %s239 = sld [smem:[#allocation2]]
    %s240 = sld [smem:[#allocation11]]
    %v241 = vstv %s240
    %v242 = vmul.f32 %v241, %v146
    %v243 = vstv %s239
    %v244 = vadd.f32 %v243, %v242
    %s245 = sld [smem:[#allocation11 + $0x1]]
    %v246 = vstv %s245
    %v247 = vmul.f32 %v246, %v169
    %v248 = vadd.f32 %v244, %v247
    %s249 = sld [smem:[#allocation11 + $0x2]]
    %v250 = vstv %s249
    %v251 = vmul.f32 %v250, %v192
    %v252 = vadd.f32 %v248, %v251
    %s253 = sld [smem:[#allocation11 + $0x3]]
    %v254 = vstv %s253
    %v255 = vmul.f32 %v254, %v215
    %v256 = vadd.f32 %v252, %v255
    %s257 = sld [smem:[#allocation11 + $0x4]]
    %v258 = vstv %s257
    %v259 = vmul.f32 %v258, %v238
    %v260 = vadd.f32 %v256, %v259
    %261 = vst [vmem:[#allocation13] sm:$0x1] %v260
    // Predicated region
    $region50: #{tpu_custom_call.1} parent=1 // pred_check
      _
    $region51: #{tpu_custom_call.1} parent=1 // pred_check_branch
      %263 = sbr.rel (0) target = $region53
    $region52: #{tpu_custom_call.1} parent=1 // pred_region
      %265 = vsyncadd [#allocation4], 0
      %s267 = sshll.u32 [#allocation13], 4
      %s268 = int_to_ptr.vmem [resolvable:$true] %s267
      %s269 = sshll.u32 %s7, 4
      %s270 = int_to_ptr.hbm [resolvable:$true] %s269
      %272 = dma.vmem_to_hbm [thread:$0]  %s268, 16, %s270, [#allocation4]
    $region53: #{tpu_custom_call.1} parent=1 // pred_fallthru
      _
    // Predicated region
    $region54: #{tpu_custom_call.1} parent=1 // pred_check
      _
    $region55: #{tpu_custom_call.1} parent=1 // pred_check_branch
      %274 = sbr.rel (0) target = $region57
    $region56: #{tpu_custom_call.1} parent=1 // pred_region
      %276 = dma.done [#allocation4], 16
    $region57: #{tpu_custom_call.1} parent=1 // pred_fallthru
      _
    %277 = vsyncpa [#allocation4], 1
    %278 = vsyncpa [#allocation5], 1
    %279 = vsyncpa [#allocation6], 1
    %280 = vsyncpa [#allocation8], 1
    %281 = vsyncpa [#allocation12], 1

</llo_original>
